<compile_context>
chip_gen: v6e
topology: v6e:2x2x1
jax: 0.10.0
libtpu: 0.0.40
codegen_flags: <defaults>
</compile_context>

<pallas_src>
import jax
import jax.numpy as jnp
from jax.experimental import pallas as pl
from jax.experimental.pallas import tpu as pltpu


_VMEM_LIMIT_BYTES = 48 * 1024 * 1024  # safe on v5e/v6e (128 MiB) and v7x (64 MiB)


def _round_up(x: int, m: int) -> int:
    return (x + m - 1) // m * m


def _head_kernel(x_ref, w1_ref, b1_ref, w2_ref, b2_ref, o_ref):
    """Fused: tanh(x @ W1 + b1) @ W2 + b2 (dropout == identity at inference).

    The activation is cast to the weight dtype *inside* the kernel (VPU cast,
    avoids a wrapper-side HBM round trip). Accumulation, bias add and tanh
    stay f32 so the bf16-operand path is safe on v5e.
    # TODO(synk): training-mode dropout (pltpu.prng_random_bits mask) not implemented.
    """
    w1 = w1_ref[...]                                             # [H, H]
    x = x_ref[...].astype(w1.dtype)                              # [TB, H] in-kernel cast
    h = jnp.tanh(
        jnp.dot(x, w1, preferred_element_type=jnp.float32)
        + b1_ref[...]                                            # [1, H] broadcast
    )                                                            # [TB, H] f32
    w2 = w2_ref[...]                                             # [H, Lp]
    y = (
        jnp.dot(h.astype(w2.dtype), w2, preferred_element_type=jnp.float32)
        + b2_ref[...]                                            # [1, Lp] broadcast
    )                                                            # [TB, Lp] f32
    o_ref[...] = y.astype(o_ref.dtype)


def prepare_head_params(w_dense, b_dense, w_out, b_out, *,
                        matmul_dtype=jnp.bfloat16):
    """One-time parameter prep (hoisted out of the per-call path).

    * w_dense [H, H], w_out [H, L] are stored [in, out] (transpose of
      nn.Linear.weight) and cast to `matmul_dtype` (bf16 by default).
    * The label dim is zero-padded to a multiple of 128 lanes so the kernel's
      output store is lane-dense.
    * Biases stay f32 and are reshaped to [1, out] for in-kernel broadcast.

    Returns ((w1, b1, w2, b2), num_labels).
    """
    H, H2 = w_dense.shape
    assert H == H2, (
        "w_dense must be [hidden, hidden] stored [in, out] "
        "(transpose of PyTorch nn.Linear.weight)")
    assert w_out.shape[0] == H, "w_out must be [hidden, num_labels] stored [in, out]"
    L = w_out.shape[1]
    assert b_dense.shape == (H,) and b_out.shape == (L,)

    Lp = _round_up(max(L, 1), 128)
    w1 = w_dense.astype(matmul_dtype)
    w2 = jnp.zeros((H, Lp), matmul_dtype).at[:, :L].set(w_out.astype(matmul_dtype))
    b1 = b_dense.astype(jnp.float32).reshape(1, H)
    b2 = jnp.zeros((1, Lp), jnp.float32).at[0, :L].set(b_out.astype(jnp.float32))
    return (w1, b1, w2, b2), L


def _choose_batch_tile(B: int, block_b: int):
    """Pick a row-tile size, or None for the gridless path.

    Grid path whenever the batch either exceeds one block or can fill >= 2
    tiles of >= 256 rows (so v7x megacore shards the parallel B axis across
    both TensorCores). Tiles are multiples of 8 rows (sublane constraint).
    """
    min_tb = 256
    if B <= max(block_b, 8) and B < 2 * min_tb:
        return None
    half = _round_up(pl.cdiv(B, 2), 8)          # aim for >= 2 grid steps
    tb = min(block_b, max(min_tb, half))
    tb = max(8, _round_up(tb, 8))
    if tb >= B or tb % 8 != 0:
        return None
    return tb


def apply_classification_head(features, prepared_params, num_labels, *,
                              block_b: int = 512):
    """features: [B, H]; prepared_params from prepare_head_params().
    Returns logits [B, num_labels] in features.dtype."""
    w1, b1, w2, b2 = prepared_params
    B, H = features.shape
    assert w1.shape == (H, H)
    Lp = w2.shape[1]
    L = num_labels
    out_dtype = features.dtype

    tb = _choose_batch_tile(B, block_b)

    if tb is None:
        # Small / overhead-bound path: gridless call, everything whole-array
        # resident in VMEM for the single invocation.
        out = pl.pallas_call(
            _head_kernel,
            out_shape=jax.ShapeDtypeStruct((B, Lp), out_dtype),
            in_specs=[pl.BlockSpec(memory_space=pltpu.MemorySpace.VMEM)] * 5,
            out_specs=pl.BlockSpec(memory_space=pltpu.MemorySpace.VMEM),
            compiler_params=pltpu.CompilerParams(
                vmem_limit_bytes=_VMEM_LIMIT_BYTES),
        )(features, w1, b1, w2, b2)
        return out[:, :L]

    # Grid path: pipeline (tb, H) feature tiles and (tb, Lp) output tiles over
    # the batch. Weights / biases are whole-array VMEM operands: DMA'd once,
    # single-buffered, shared by every grid step. No batch padding: the
    # trailing partial block is handled by the masked output store (out-of-
    # range rows flow through the math but are never written; rows are
    # independent so valid rows are unaffected).
    grid = (pl.cdiv(B, tb),)
    out = pl.pallas_call(
        _head_kernel,
        out_shape=jax.ShapeDtypeStruct((B, Lp), out_dtype),
        grid=grid,
        in_specs=[
            pl.BlockSpec((tb, H), lambda i: (i, 0)),              # features tile (pipelined)
            pl.BlockSpec(memory_space=pltpu.MemorySpace.VMEM),    # dense weight (resident, 1x)
            pl.BlockSpec(memory_space=pltpu.MemorySpace.VMEM),    # dense bias
            pl.BlockSpec(memory_space=pltpu.MemorySpace.VMEM),    # out_proj weight
            pl.BlockSpec(memory_space=pltpu.MemorySpace.VMEM),    # out_proj bias
        ],
        out_specs=pl.BlockSpec((tb, Lp), lambda i: (i, 0)),
        compiler_params=pltpu.CompilerParams(
            dimension_semantics=("parallel",),
            vmem_limit_bytes=_VMEM_LIMIT_BYTES,
        ),
    )(features, w1, b1, w2, b2)
    return out[:, :L]


def wav2vec2_classification_head(
    features, w_dense, b_dense, w_out, b_out,
    *, block_b: int = 512, use_bf16_matmul: bool = True,
):
    """Convenience wrapper: prep params then apply.

    For repeated calls with fixed parameters, call prepare_head_params() once
    and use apply_classification_head() directly (avoids per-call padding /
    casting work).
    """
    matmul_dtype = jnp.bfloat16 if use_bf16_matmul else features.dtype
    prepared, L = prepare_head_params(
        w_dense, b_dense, w_out, b_out, matmul_dtype=matmul_dtype)
    return apply_classification_head(features, prepared, L, block_b=block_b)


def _reference(features, w_dense, b_dense, w_out, b_out):
    h = jnp.tanh(features @ w_dense + b_dense)
    return h @ w_out + b_out


if __name__ == "__main__":
    # config.hidden_size = 32, config.num_labels = 4
    H, L = 32, 4
    key = jax.random.PRNGKey(0)
    k_x, k_w1, k_b1, k_w2, k_b2, k_x2 = jax.random.split(key, 6)

    # Deterministic "linear layer" parameters (stored as [in, out]).
    w_dense = jax.random.normal(k_w1, (H, H), dtype=jnp.float32) * 0.05
    b_dense = jax.random.normal(k_b1, (H,), dtype=jnp.float32) * 0.01
    w_out = jax.random.normal(k_w2, (H, L), dtype=jnp.float32) * 0.05
    b_out = jax.random.normal(k_b2, (L,), dtype=jnp.float32) * 0.01

    # 1) Small-batch gridless path, f32 operands (tight tolerance).
    B = 8
    features = jax.random.normal(k_x, (B, H), dtype=jnp.float32)
    logits = wav2vec2_classification_head(
        features, w_dense, b_dense, w_out, b_out, use_bf16_matmul=False)
    logits = jax.block_until_ready(logits)
    ref = _reference(features, w_dense, b_dense, w_out, b_out)
    assert logits.shape == (B, L)
    assert jnp.allclose(logits, ref, atol=1e-5, rtol=1e-5), "small f32 path mismatch"

    # 2) B-tiled grid path with a ragged trailing block (B=24, tb=8 -> 3 steps;
    #    also exercised with B=20 -> partial last block), f32 operands.
    B2 = 24
    features2 = jax.random.normal(k_x2, (B2, H), dtype=jnp.float32)
    logits2 = wav2vec2_classification_head(
        features2, w_dense, b_dense, w_out, b_out,
        block_b=8, use_bf16_matmul=False)
    logits2 = jax.block_until_ready(logits2)
    ref2 = _reference(features2, w_dense, b_dense, w_out, b_out)
    assert logits2.shape == (B2, L)
    assert jnp.allclose(logits2, ref2, atol=1e-5, rtol=1e-5), "tiled f32 path mismatch"

    features3 = features2[:20]  # ragged: 20 rows with tb=8 -> blocks of 8, 8, 4
    logits3 = wav2vec2_classification_head(
        features3, w_dense, b_dense, w_out, b_out,
        block_b=8, use_bf16_matmul=False)
    logits3 = jax.block_until_ready(logits3)
    ref3 = _reference(features3, w_dense, b_dense, w_out, b_out)
    assert logits3.shape == (20, L)
    assert jnp.allclose(logits3, ref3, atol=1e-5, rtol=1e-5), "ragged-block mismatch"

    # 3) Default path: bf16 MXU operands with one-time param prep
    #    (f32 accumulation / bias / tanh), looser tolerance.
    prepared, num_labels = prepare_head_params(
        w_dense, b_dense, w_out, b_out, matmul_dtype=jnp.bfloat16)
    logits_bf16 = apply_classification_head(features, prepared, num_labels)
    logits_bf16 = jax.block_until_ready(logits_bf16)
    assert logits_bf16.shape == (B, L)
    assert jnp.allclose(logits_bf16, ref, atol=5e-2, rtol=5e-2), "bf16 path mismatch"

    logits2_bf16 = wav2vec2_classification_head(
        features2, w_dense, b_dense, w_out, b_out, block_b=8)  # default bf16, grid path
    logits2_bf16 = jax.block_until_ready(logits2_bf16)
    assert logits2_bf16.shape == (B2, L)
    assert jnp.allclose(logits2_bf16, ref2, atol=5e-2, rtol=5e-2), "bf16 tiled mismatch"

    print("KERNEL_OK")
</pallas_src>

<mosaic_0001>
module attributes {stable_mosaic.version = 11 : i64} {
  func.func @_head_kernel(%arg0: memref<8x32xf32, #tpu.memory_space<vmem>>, %arg1: memref<32x32xf32, #tpu.memory_space<vmem>>, %arg2: memref<1x32xf32, #tpu.memory_space<vmem>>, %arg3: memref<32x128xf32, #tpu.memory_space<vmem>>, %arg4: memref<1x128xf32, #tpu.memory_space<vmem>>, %arg5: memref<8x128xf32, #tpu.memory_space<vmem>>) attributes {dimension_semantics = [], scalar_prefetch = 0 : i64, scratch_operands = 0 : i64, tpu.core_type = #tpu.core_type<tc>} {
    %c0 = arith.constant 0 : index
    %c0_0 = arith.constant 0 : index
    %0 = vector.load %arg1[%c0, %c0_0] : memref<32x32xf32, #tpu.memory_space<vmem>>, vector<32x32xf32>
    %c0_1 = arith.constant 0 : index
    %c0_2 = arith.constant 0 : index
    %1 = vector.load %arg0[%c0_1, %c0_2] : memref<8x32xf32, #tpu.memory_space<vmem>>, vector<8x32xf32>
    %cst = arith.constant dense<0.000000e+00> : vector<8x32xf32>
    %2 = tpu.matmul %1, %0, %cst {dimension_numbers = #tpu.dot_dimension_numbers<[1], [0], [0], [1], [0, 0, 1, 1], [], []>} : vector<8x32xf32>, vector<32x32xf32>, vector<8x32xf32> -> vector<8x32xf32>
    %c0_3 = arith.constant 0 : index
    %c0_4 = arith.constant 0 : index
    %3 = vector.load %arg2[%c0_3, %c0_4] : memref<1x32xf32, #tpu.memory_space<vmem>>, vector<1x32xf32>
    %4 = vector.broadcast %3 : vector<1x32xf32> to vector<8x32xf32>
    %5 = arith.addf %2, %4 : vector<8x32xf32>
    %6 = math.tanh %5 : vector<8x32xf32>
    %c0_5 = arith.constant 0 : index
    %c0_6 = arith.constant 0 : index
    %7 = vector.load %arg3[%c0_5, %c0_6] : memref<32x128xf32, #tpu.memory_space<vmem>>, vector<32x128xf32>
    %cst_7 = arith.constant dense<0.000000e+00> : vector<8x128xf32>
    %8 = tpu.matmul %6, %7, %cst_7 {dimension_numbers = #tpu.dot_dimension_numbers<[1], [0], [0], [1], [0, 0, 1, 1], [], []>} : vector<8x32xf32>, vector<32x128xf32>, vector<8x128xf32> -> vector<8x128xf32>
    %c0_8 = arith.constant 0 : index
    %c0_9 = arith.constant 0 : index
    %9 = vector.load %arg4[%c0_8, %c0_9] : memref<1x128xf32, #tpu.memory_space<vmem>>, vector<1x128xf32>
    %10 = vector.broadcast %9 : vector<1x128xf32> to vector<8x128xf32>
    %11 = arith.addf %8, %10 : vector<8x128xf32>
    %c0_10 = arith.constant 0 : index
    %c0_11 = arith.constant 0 : index
    %12 = vector.load %arg5[%c0_10, %c0_11] : memref<8x128xf32, #tpu.memory_space<vmem>>, vector<8x128xf32>
    tpu.vector_store %arg5[%c0_10, %c0_11], %11 {strides = array<i32>} : memref<8x128xf32, #tpu.memory_space<vmem>>, vector<8x128xf32>,
    return
  }
}

</mosaic_0001>

<llo_original>
// kernel: tpu_custom_call.1
$region0: #{tpu_custom_call.1}
  #allocation0 [shape = 'u32[]', space=smem, size = 0x4, offset = 0x4, fixed_abs, tag = 'smem constant byte address 0x4 - core index']
  #allocation1 [shape = 'u32[144,128]{1,0:T(1,128)}', space=vmem, size = 0x12000, scoped, tag = 'internal scratch']
  %s0 = inlined_call_operand.hbm [shape: f32[8,32], index: 0, kind: input, shape index: {}]
  %s1 = inlined_call_operand.hbm [shape: f32[32,32], index: 1, kind: input, shape index: {}]
  %s2 = inlined_call_operand.vmem [shape: f32[1,32], index: 2, kind: input, shape index: {}]
  %s3 = inlined_call_operand.hbm [shape: f32[32,128], index: 3, kind: input, shape index: {}]
  %s4 = inlined_call_operand.vmem [shape: f32[1,128], index: 4, kind: input, shape index: {}]
  %s5 = inlined_call_operand.hbm [shape: f32[8,128], index: 5, kind: output, shape index: {}]
  %s6 = sld [smem:[#allocation0]]
  $region42: #{tpu_custom_call.1} parent=0
    _
  %s8 = ssub.s32 1, %s6
  %s9 = scalar_select 0, %s8, %s6
  $region1: #{tpu_custom_call.1} parent=0
    #allocation2 [shape = 'u8[4096]{0}', space=vmem, size = 0x1000, scoped, tag = 'input window, operand 0, single buffered']
    #allocation3 [shape = 's32[1]{0}', space=sflag, size = 0x4, scoped, tag = 'scoped memory for tpu_custom_call.1']
    #allocation4 [shape = 's32[1]{0}', space=sflag, size = 0x4, scoped, tag = 'scoped memory for tpu_custom_call.1']
    #allocation5 [shape = 'u8[16384]{0}', space=vmem, size = 0x4000, scoped, tag = 'input window, operand 1, single buffered']
    #allocation6 [shape = 's32[1]{0}', space=sflag, size = 0x4, scoped, tag = 'scoped memory for tpu_custom_call.1']
    #allocation7 [shape = 'u8[16384]{0}', space=vmem, size = 0x4000, scoped, tag = 'input window, operand 3, single buffered']
    #allocation8 [shape = 'u8[4096]{0}', space=vmem, size = 0x1000, scoped, tag = 'output window, operand 0, single buffered']
    %10 = vsyncpa [#allocation3], 0
    %11 = vsyncpa [#allocation6], 0
    %12 = vsyncpa [#allocation4], 0
    // Predicated region
    $region2: #{tpu_custom_call.1} parent=1 // pred_check
      _
    $region3: #{tpu_custom_call.1} parent=1 // pred_check_branch
      %14 = sbr.rel (0) target = $region5
    $region4: #{tpu_custom_call.1} parent=1 // pred_region
      %s16 = ssub.s32 128, 128
      %17 = vsyncadd [#allocation3], %s16
      %s19 = sshll.u32 [#allocation2], 4
      %s20 = int_to_ptr.vmem [resolvable:$true] %s19
      %22 = dma.hbm_to_vmem [thread:$0]  %s0, 128, %s20, [#allocation3]
    $region5: #{tpu_custom_call.1} parent=1 // pred_fallthru
      _
    // Predicated region
    $region6: #{tpu_custom_call.1} parent=1 // pred_check
      _
    $region7: #{tpu_custom_call.1} parent=1 // pred_check_branch
      %24 = sbr.rel (0) target = $region9
    $region8: #{tpu_custom_call.1} parent=1 // pred_region
      %s26 = ssub.s32 512, 512
      %27 = vsyncadd [#allocation6], %s26
      %s28 = sshll.u32 [#allocation5], 4
      %s29 = int_to_ptr.vmem [resolvable:$true] %s28
      %34 = dma.hbm_to_vmem [thread:$0]  %s1, 512, %s29, [#allocation6], 128, 128, 8
    $region9: #{tpu_custom_call.1} parent=1 // pred_fallthru
      _
    // Predicated region
    $region10: #{tpu_custom_call.1} parent=1 // pred_check
      _
    $region11: #{tpu_custom_call.1} parent=1 // pred_check_branch
      %36 = sbr.rel (0) target = $region13
    $region12: #{tpu_custom_call.1} parent=1 // pred_region
      _
    $region13: #{tpu_custom_call.1} parent=1 // pred_fallthru
      _
    // Predicated region
    $region14: #{tpu_custom_call.1} parent=1 // pred_check
      _
    $region15: #{tpu_custom_call.1} parent=1 // pred_check_branch
      %38 = sbr.rel (0) target = $region17
    $region16: #{tpu_custom_call.1} parent=1 // pred_region
      %s40 = ssub.s32 512, 512
      %41 = vsyncadd [#allocation6], %s40
      %s42 = sshll.u32 [#allocation7], 4
      %s43 = int_to_ptr.vmem [resolvable:$true] %s42
      %48 = dma.hbm_to_vmem [thread:$0]  %s3, 512, %s43, [#allocation6], 128, 128, 8
    $region17: #{tpu_custom_call.1} parent=1 // pred_fallthru
      _
    // Predicated region
    $region18: #{tpu_custom_call.1} parent=1 // pred_check
      _
    $region19: #{tpu_custom_call.1} parent=1 // pred_check_branch
      %50 = sbr.rel (0) target = $region21
    $region20: #{tpu_custom_call.1} parent=1 // pred_region
      _
    $region21: #{tpu_custom_call.1} parent=1 // pred_fallthru
      _
    // Predicated region
    $region22: #{tpu_custom_call.1} parent=1 // pred_check
      _
    $region23: #{tpu_custom_call.1} parent=1 // pred_check_branch
      %52 = sbr.rel (0) target = $region25
    $region24: #{tpu_custom_call.1} parent=1 // pred_region
      %53 = dma.done [#allocation3], 128
    $region25: #{tpu_custom_call.1} parent=1 // pred_fallthru
      _
    // Predicated region
    $region26: #{tpu_custom_call.1} parent=1 // pred_check
      _
    $region27: #{tpu_custom_call.1} parent=1 // pred_check_branch
      %55 = sbr.rel (0) target = $region29
    $region28: #{tpu_custom_call.1} parent=1 // pred_region
      %56 = dma.done [#allocation6], 512
    $region29: #{tpu_custom_call.1} parent=1 // pred_fallthru
      _
    // Predicated region
    $region30: #{tpu_custom_call.1} parent=1 // pred_check
      _
    $region31: #{tpu_custom_call.1} parent=1 // pred_check_branch
      %58 = sbr.rel (0) target = $region33
    $region32: #{tpu_custom_call.1} parent=1 // pred_region
      %59 = dma.done [#allocation6], 512
    $region33: #{tpu_custom_call.1} parent=1 // pred_fallthru
      _
    %v60 = vld [vmem:[#allocation5] sm:$0xff]
    %v61 = vld [vmem:[#allocation5 + $0x8] sm:$0xff]
    %v62 = vld [vmem:[#allocation5 + $0x10] sm:$0xff]
    %v63 = vld [vmem:[#allocation5 + $0x18] sm:$0xff]
    %v64 = vld [vmem:[#allocation2] sm:$0xff]
    %v65 = vld [vmem:[%s2] sm:$0x1]
    %v67 = vlaneseq
    %v68 = vshrl.u32 %v67, 7
    %v69 = vsub.s32 0, %v68
    %v70 = vrot.slane %v65, %v69
    %vm72 = vcmask 261120
    %v74 = vsel %vm72, %v64, 0
    %76 = vmatprep.subr.mxu0 0.0
    %77 = vmatpush1.msra.mxu0 0.0
    %78 = vmatprep.subr.mxu0 0.0
    %79 = vmatpush1.msra.mxu0 0.0
    %80 = vmatprep.subr.mxu0 0.0
    %81 = vmatpush1.msra.mxu0 0.0
    %82 = vmatprep.subr.mxu0 0.0
    %83 = vmatpush1.msra.mxu0 0.0
    %84 = vmatprep.subr.mxu0 0.0
    %85 = vmatpush1.msra.mxu0 0.0
    %86 = vmatprep.subr.mxu0 0.0
    %87 = vmatpush1.msra.mxu0 0.0
    %88 = vmatprep.subr.mxu0 0.0
    %89 = vmatpush1.msra.mxu0 0.0
    %90 = vmatprep.subr.mxu0 0.0
    %91 = vmatpush1.msra.mxu0 0.0
    %92 = vmatprep.subr.mxu0 0.0
    %93 = vmatpush1.msra.mxu0 0.0
    %94 = vmatprep.subr.mxu0 0.0
    %95 = vmatpush1.msra.mxu0 0.0
    %96 = vmatprep.subr.mxu0 0.0
    %97 = vmatpush1.msra.mxu0 0.0
    %98 = vmatprep.subr.mxu0 0.0
    %99 = vmatpush1.msra.mxu0 0.0
    %100 = vmatprep.subr.mxu0 0.0
    %101 = vmatpush1.msra.mxu0 %v63
    %102 = vmatprep.subr.mxu0 0.0
    %103 = vmatpush1.msra.mxu0 %v62
    %104 = vmatprep.subr.mxu0 0.0
    %105 = vmatpush1.msra.mxu0 %v61
    %106 = vmatprep.subr.mxu0 0.0
    %107 = vmatpush1.msra.mxu0 %v60
    %108 = vmatprep.subr.mxu0 0.0
    %109 = vmatpush2.msra.mxu0 0.0
    %110 = vmatprep.subr.mxu0 0.0
    %111 = vmatpush2.msra.mxu0 0.0
    %112 = vmatprep.subr.mxu0 0.0
    %113 = vmatpush2.msra.mxu0 0.0
    %114 = vmatprep.subr.mxu0 0.0
    %115 = vmatpush2.msra.mxu0 0.0
    %116 = vmatprep.subr.mxu0 0.0
    %117 = vmatpush2.msra.mxu0 0.0
    %118 = vmatprep.subr.mxu0 0.0
    %119 = vmatpush2.msra.mxu0 0.0
    %120 = vmatprep.subr.mxu0 0.0
    %121 = vmatpush2.msra.mxu0 0.0
    %122 = vmatprep.subr.mxu0 0.0
    %123 = vmatpush2.msra.mxu0 0.0
    %124 = vmatprep.subr.mxu0 0.0
    %125 = vmatpush2.msra.mxu0 0.0
    %126 = vmatprep.subr.mxu0 0.0
    %127 = vmatpush2.msra.mxu0 0.0
    %128 = vmatprep.subr.mxu0 0.0
    %129 = vmatpush2.msra.mxu0 0.0
    %130 = vmatprep.subr.mxu0 0.0
    %131 = vmatpush2.msra.mxu0 0.0
    %132 = vmatprep.subr.mxu0 0.0
    %133 = vmatpush2.msra.mxu0 0.0
    %134 = vmatprep.subr.mxu0 0.0
    %135 = vmatpush2.msra.mxu0 0.0
    %136 = vmatprep.subr.mxu0 0.0
    %137 = vmatpush2.msra.mxu0 0.0
    %138 = vmatprep.subr.mxu0 0.0
    %139 = vmatpush2.msra.mxu0 0.0
    %140 = vmatprep.mubr.f32.mxu0 0.0
    %141 = vmatmul.mubr.f32.gmra.mxu0 %v74
    %v142 = vpop.f32.mrf.mxu0
    %v143 = vadd.f32 %v70, %v142
    %v144 = vpop.f32.mrf.mxu0
    %145 = vdwg.mxu0
    %v146 = vtanh.pop %v143
    %v147 = vld [vmem:[#allocation7] sm:$0xff]
    %v148 = vld [vmem:[#allocation7 + $0x8] sm:$0xff]
    %v149 = vld [vmem:[#allocation7 + $0x10] sm:$0xff]
    %v150 = vld [vmem:[#allocation7 + $0x18] sm:$0xff]
    %v151 = vld [vmem:[%s4] sm:$0x1]
    %v153 = vlaneseq
    %v154 = vshrl.u32 %v153, 7
    %v155 = vsub.s32 0, %v154
    %v156 = vrot.slane %v151, %v155
    %v159 = vsel %vm72, %v146, 0
    %161 = vmatprep.subr.mxu0 0.0
    %162 = vmatpush1.msra.mxu0 0.0
    %163 = vmatprep.subr.mxu0 0.0
    %164 = vmatpush1.msra.mxu0 0.0
    %165 = vmatprep.subr.mxu0 0.0
    %166 = vmatpush1.msra.mxu0 0.0
    %167 = vmatprep.subr.mxu0 0.0
    %168 = vmatpush1.msra.mxu0 0.0
    %169 = vmatprep.subr.mxu0 0.0
    %170 = vmatpush1.msra.mxu0 0.0
    %171 = vmatprep.subr.mxu0 0.0
    %172 = vmatpush1.msra.mxu0 0.0
    %173 = vmatprep.subr.mxu0 0.0
    %174 = vmatpush1.msra.mxu0 0.0
    %175 = vmatprep.subr.mxu0 0.0
    %176 = vmatpush1.msra.mxu0 0.0
    %177 = vmatprep.subr.mxu0 0.0
    %178 = vmatpush1.msra.mxu0 0.0
    %179 = vmatprep.subr.mxu0 0.0
    %180 = vmatpush1.msra.mxu0 0.0
    %181 = vmatprep.subr.mxu0 0.0
    %182 = vmatpush1.msra.mxu0 0.0
    %183 = vmatprep.subr.mxu0 0.0
    %184 = vmatpush1.msra.mxu0 0.0
    %185 = vmatprep.subr.mxu0 0.0
    %186 = vmatpush1.msra.mxu0 %v150
    %187 = vmatprep.subr.mxu0 0.0
    %188 = vmatpush1.msra.mxu0 %v149
    %189 = vmatprep.subr.mxu0 0.0
    %190 = vmatpush1.msra.mxu0 %v148
    %191 = vmatprep.subr.mxu0 0.0
    %192 = vmatpush1.msra.mxu0 %v147
    %193 = vmatprep.subr.mxu0 0.0
    %194 = vmatpush2.msra.mxu0 0.0
    %195 = vmatprep.subr.mxu0 0.0
    %196 = vmatpush2.msra.mxu0 0.0
    %197 = vmatprep.subr.mxu0 0.0
    %198 = vmatpush2.msra.mxu0 0.0
    %199 = vmatprep.subr.mxu0 0.0
    %200 = vmatpush2.msra.mxu0 0.0
    %201 = vmatprep.subr.mxu0 0.0
    %202 = vmatpush2.msra.mxu0 0.0
    %203 = vmatprep.subr.mxu0 0.0
    %204 = vmatpush2.msra.mxu0 0.0
    %205 = vmatprep.subr.mxu0 0.0
    %206 = vmatpush2.msra.mxu0 0.0
    %207 = vmatprep.subr.mxu0 0.0
    %208 = vmatpush2.msra.mxu0 0.0
    %209 = vmatprep.subr.mxu0 0.0
    %210 = vmatpush2.msra.mxu0 0.0
    %211 = vmatprep.subr.mxu0 0.0
    %212 = vmatpush2.msra.mxu0 0.0
    %213 = vmatprep.subr.mxu0 0.0
    %214 = vmatpush2.msra.mxu0 0.0
    %215 = vmatprep.subr.mxu0 0.0
    %216 = vmatpush2.msra.mxu0 0.0
    %217 = vmatprep.subr.mxu0 0.0
    %218 = vmatpush2.msra.mxu0 0.0
    %219 = vmatprep.subr.mxu0 0.0
    %220 = vmatpush2.msra.mxu0 0.0
    %221 = vmatprep.subr.mxu0 0.0
    %222 = vmatpush2.msra.mxu0 0.0
    %223 = vmatprep.subr.mxu0 0.0
    %224 = vmatpush2.msra.mxu0 0.0
    %225 = vmatprep.mubr.f32.mxu0 0.0
    %226 = vmatmul.mubr.f32.gmra.mxu0 %v159
    %v227 = vpop.f32.mrf.mxu0
    %v228 = vadd.f32 %v156, %v227
    %v229 = vpop.f32.mrf.mxu0
    %230 = vdwg.mxu0
    %231 = vst [vmem:[#allocation8] sm:$0xff] %v228
    // Predicated region
    $region34: #{tpu_custom_call.1} parent=1 // pred_check
      _
    $region35: #{tpu_custom_call.1} parent=1 // pred_check_branch
      %233 = sbr.rel (0) target = $region37
    $region36: #{tpu_custom_call.1} parent=1 // pred_region
      %s235 = ssub.s32 128, 128
      %236 = vsyncadd [#allocation4], %s235
      %s238 = sshll.u32 [#allocation8], 4
      %s239 = int_to_ptr.vmem [resolvable:$true] %s238
      %241 = dma.vmem_to_hbm [thread:$0]  %s239, 128, %s5, [#allocation4]
    $region37: #{tpu_custom_call.1} parent=1 // pred_fallthru
      _
    // Predicated region
    $region38: #{tpu_custom_call.1} parent=1 // pred_check
      _
    $region39: #{tpu_custom_call.1} parent=1 // pred_check_branch
      %243 = sbr.rel (0) target = $region41
    $region40: #{tpu_custom_call.1} parent=1 // pred_region
      %244 = dma.done [#allocation4], 128
    $region41: #{tpu_custom_call.1} parent=1 // pred_fallthru
      _
    %245 = vsyncpa [#allocation3], 1
    %246 = vsyncpa [#allocation6], 1
    %247 = vsyncpa [#allocation4], 1

</llo_original>
